<compile_context>
chip_gen: v5e
topology: v5e:2x2
jax: 0.10.0
libtpu: 0.0.40
codegen_flags: <defaults>
</compile_context>

<pallas_src>
import math
from functools import partial

import jax
import jax.numpy as jnp
from jax import lax
from jax.experimental import pallas as pl
from jax.experimental.pallas import tpu as pltpu


def _round_up(x: int, m: int) -> int:
    return ((x + m - 1) // m) * m


def _emb_concat_kernel(*refs):
    """refs = (idx_ref, w_ref_0, ..., w_ref_{K-1}, out_ref).

    idx_ref : int32 [TB, K]            one column of indices per field
    w_ref_k : f32   [nt_pad_k, emb_k]  whole padded table (VMEM-resident)
    out_ref : f32   [TB, total_dim]
    """
    idx_ref = refs[0]
    w_refs = refs[1:-1]
    out_ref = refs[-1]

    idx = idx_ref[...]                          # (TB, K) int32
    tb = idx.shape[0]

    embs = []
    for k, w_ref in enumerate(w_refs):          # K is tiny & static -> unrolled
        nt = w_ref.shape[0]
        iota = lax.broadcasted_iota(jnp.int32, (tb, nt), 1)
        one_hot = (idx[:, k:k + 1] == iota).astype(jnp.float32)     # (TB, nt)
        # Row gather of table k as one small MXU matmul.  HIGHEST precision
        # keeps the f32 pass-through exact (no bf16 rounding of table values).
        embs.append(jnp.dot(one_hot, w_ref[...],
                            preferred_element_type=jnp.float32,
                            precision=lax.Precision.HIGHEST))
    # One full-block store of the concatenated embeddings.
    out_ref[...] = jnp.concatenate(embs, axis=-1)


def prepare_tables(tables):
    """Pad each table's row count up to a multiple of 8 (sublane alignment).

    Call ONCE (module init) and reuse the result for every forward — this
    keeps per-call work down to the index stack + one pallas_call.
    """
    padded = []
    for t in tables:
        nt, _ = t.shape
        nt_pad = _round_up(max(int(nt), 1), 8)
        padded.append(jnp.pad(t.astype(jnp.float32),
                              ((0, nt_pad - int(nt)), (0, 0))))
    return tuple(padded)


def embedding_graph_attrs(index_arrays, padded_tables, *, block_rows=2048):
    """index_arrays: list of int [B]; padded_tables: output of prepare_tables.

    Returns float32 [B, sum(emb_dim_k)]  (== torch.cat([emb_k(idx_k)], -1)).
    """
    n_fields = len(padded_tables)
    assert n_fields == len(index_arrays) and n_fields > 0, \
        "empty graph_attributes: torch module returns data unchanged"
    B = int(index_arrays[0].shape[0])

    emb_dims = [int(t.shape[1]) for t in padded_tables]
    total_dim = sum(emb_dims)

    # Stack per-field indices into one int32 [B, K] array (single VMEM input).
    idx = jnp.stack([a.astype(jnp.int32) for a in index_arrays], axis=-1)

    # Row block: large to amortize per-grid-step overhead, multiple of 8,
    # capped at ceil(B/2) so the parallel axis can use both v7x TensorCores.
    TB = min(_round_up(block_rows, 8), max(_round_up(pl.cdiv(B, 2), 8), 8))
    n_blocks = pl.cdiv(B, TB)

    # Explicit scoped-VMEM budget (tables + double-buffered idx/out blocks),
    # clamped to the 64 MiB physical VMEM of v7x.
    table_bytes = sum(int(t.size) * 4 for t in padded_tables)
    block_bytes = TB * (n_fields * 4 + total_dim * 4)
    vmem_limit = int(min(max(2 * (table_bytes + block_bytes) + (4 << 20),
                             32 << 20),
                         64 << 20))

    grid_spec = pltpu.PrefetchScalarGridSpec(
        num_scalar_prefetch=0,
        grid=(n_blocks,),
        in_specs=(
            # indices: one (TB, K) block per grid step (ragged last block OK)
            [pl.BlockSpec((TB, n_fields), lambda i: (i, 0))]
            # each table: whole array, constant block index -> fetched once
            + [pl.BlockSpec((int(t.shape[0]), int(t.shape[1])),
                            lambda i: (0, 0))
               for t in padded_tables]
        ),
        out_specs=pl.BlockSpec((TB, total_dim), lambda i: (i, 0)),
    )

    out = pl.pallas_call(
        _emb_concat_kernel,
        out_shape=jax.ShapeDtypeStruct((B, total_dim), jnp.float32),
        grid_spec=grid_spec,
        compiler_params=pltpu.CompilerParams(
            dimension_semantics=("parallel",),
            vmem_limit_bytes=vmem_limit),
    )(idx, *padded_tables)
    return out


if __name__ == "__main__":
    key = jax.random.PRNGKey(0)

    # graph_attributes config (mirrors the torch __init__ loop):
    #   field_a: actual_num_types=5, embedding_dimensionality=16
    #   field_b: actual_num_types=7, embedding_dimensionality=32
    graph_attributes = {
        "field_a": {"actual_num_types": 5, "embedding_dimensionality": 16},
        "field_b": {"actual_num_types": 7, "embedding_dimensionality": 32},
    }
    B = 8  # number of graphs in the batch

    # Deterministic param init: normal(mean=0, std=math.isqrt(embedding_dim)),
    # exactly as torch.nn.init.normal_ in the module's __init__ (isqrt per spec).
    tables = []
    index_arrays = []
    for field, cfg in graph_attributes.items():
        key, k_w, k_i = jax.random.split(key, 3)
        n_types = cfg["actual_num_types"]
        emb_dim = cfg["embedding_dimensionality"]
        std = float(math.isqrt(emb_dim))
        w = std * jax.random.normal(k_w, (n_types, emb_dim), dtype=jnp.float32)
        tables.append(w)
        # data[field] in torch has shape [B, 1]; forward squeezes the last dim.
        idx = jax.random.randint(k_i, (B, 1), 0, n_types, dtype=jnp.int32)
        index_arrays.append(jnp.squeeze(idx, axis=-1))

    # prepare_tables once (module-init time), then forward.
    padded_tables = prepare_tables(tables)
    out = embedding_graph_attrs(index_arrays, padded_tables)
    out = jax.block_until_ready(out)

    # Pure-JAX reference (embedding lookup + concat) for correctness.
    ref = jnp.concatenate(
        [jnp.take(t, ix, axis=0) for t, ix in zip(tables, index_arrays)],
        axis=-1,
    )
    assert out.shape == (B, sum(t.shape[-1] for t in tables))
    assert jnp.allclose(out, ref), "Pallas output mismatch vs reference"

    print("KERNEL_OK")
</pallas_src>

<mosaic_0001>
module attributes {stable_mosaic.version = 11 : i64} {
  func.func @_emb_concat_kernel(%arg0: i32, %arg1: memref<8x2xi32, #tpu.memory_space<vmem>>, %arg2: memref<8x16xf32, #tpu.memory_space<vmem>>, %arg3: memref<8x32xf32, #tpu.memory_space<vmem>>, %arg4: memref<8x48xf32, #tpu.memory_space<vmem>>) attributes {dimension_semantics = [#tpu.dimension_semantics<parallel>], iteration_bounds = array<i64: 1>, scalar_prefetch = 0 : i64, scratch_operands = 0 : i64, tpu.core_type = #tpu.core_type<tc>, window_params = [{transform_indices = @transform_0, window_bounds = array<i64: 8, 2>}, {pipeline_mode = #tpu.pipeline_mode<synchronous>, transform_indices = @transform_1, window_bounds = array<i64: 8, 16>}, {pipeline_mode = #tpu.pipeline_mode<synchronous>, transform_indices = @transform_2, window_bounds = array<i64: 8, 32>}, {transform_indices = @transform_3, window_bounds = array<i64: 8, 48>}]} {
    %c0 = arith.constant 0 : index
    %c0_0 = arith.constant 0 : index
    %0 = vector.load %arg1[%c0, %c0_0] : memref<8x2xi32, #tpu.memory_space<vmem>>, vector<8x2xi32>
    %1 = tpu.iota {dimensions = array<i32: 1>} : vector<8x8xi32>
    %2 = vector.extract_strided_slice %0 {offsets = [0, 0], sizes = [8, 1], strides = [1, 1]} : vector<8x2xi32> to vector<8x1xi32>
    %3 = vector.broadcast %2 : vector<8x1xi32> to vector<8x8xi32>
    %4 = arith.cmpi eq, %3, %1 : vector<8x8xi32>
    %5 = arith.extui %4 : vector<8x8xi1> to vector<8x8xi32>
    %6 = arith.sitofp %5 : vector<8x8xi32> to vector<8x8xf32>
    %c0_1 = arith.constant 0 : index
    %c0_2 = arith.constant 0 : index
    %7 = vector.load %arg2[%c0_1, %c0_2] : memref<8x16xf32, #tpu.memory_space<vmem>>, vector<8x16xf32>
    %cst = arith.constant dense<0.000000e+00> : vector<8x16xf32>
    %8 = tpu.matmul %6, %7, %cst {dimension_numbers = #tpu.dot_dimension_numbers<[1], [0], [0], [1], [0, 0, 1, 1], [], []>, precision = #tpu.contract_precision<fp32>} : vector<8x8xf32>, vector<8x16xf32>, vector<8x16xf32> -> vector<8x16xf32>
    %9 = tpu.iota {dimensions = array<i32: 1>} : vector<8x8xi32>
    %10 = vector.extract_strided_slice %0 {offsets = [0, 1], sizes = [8, 1], strides = [1, 1]} : vector<8x2xi32> to vector<8x1xi32>
    %11 = vector.broadcast %10 : vector<8x1xi32> to vector<8x8xi32>
    %12 = arith.cmpi eq, %11, %9 : vector<8x8xi32>
    %13 = arith.extui %12 : vector<8x8xi1> to vector<8x8xi32>
    %14 = arith.sitofp %13 : vector<8x8xi32> to vector<8x8xf32>
    %c0_3 = arith.constant 0 : index
    %c0_4 = arith.constant 0 : index
    %15 = vector.load %arg3[%c0_3, %c0_4] : memref<8x32xf32, #tpu.memory_space<vmem>>, vector<8x32xf32>
    %cst_5 = arith.constant dense<0.000000e+00> : vector<8x32xf32>
    %16 = tpu.matmul %14, %15, %cst_5 {dimension_numbers = #tpu.dot_dimension_numbers<[1], [0], [0], [1], [0, 0, 1, 1], [], []>, precision = #tpu.contract_precision<fp32>} : vector<8x8xf32>, vector<8x32xf32>, vector<8x32xf32> -> vector<8x32xf32>
    %17 = tpu.concatenate %8, %16 in 1 : vector<8x16xf32>, vector<8x32xf32> -> vector<8x48xf32>
    %c0_6 = arith.constant 0 : index
    %c0_7 = arith.constant 0 : index
    %18 = vector.load %arg4[%c0_6, %c0_7] : memref<8x48xf32, #tpu.memory_space<vmem>>, vector<8x48xf32>
    tpu.vector_store %arg4[%c0_6, %c0_7], %17 {strides = array<i32>} : memref<8x48xf32, #tpu.memory_space<vmem>>, vector<8x48xf32>,
    return
  }
  func.func @transform_0(%arg0: i32) -> (i32, i32) {
    %c0_i32 = arith.constant 0 : i32
    %c0_i32_0 = arith.constant 0 : i32
    return %arg0, %c0_i32 : i32, i32
  }
  func.func @transform_1(%arg0: i32) -> (i32, i32) {
    %c0_i32 = arith.constant 0 : i32
    %c0_i32_0 = arith.constant 0 : i32
    %c0_i32_1 = arith.constant 0 : i32
    return %c0_i32, %c0_i32_0 : i32, i32
  }
  func.func @transform_2(%arg0: i32) -> (i32, i32) {
    %c0_i32 = arith.constant 0 : i32
    %c0_i32_0 = arith.constant 0 : i32
    %c0_i32_1 = arith.constant 0 : i32
    return %c0_i32, %c0_i32_0 : i32, i32
  }
  func.func @transform_3(%arg0: i32) -> (i32, i32) {
    %c0_i32 = arith.constant 0 : i32
    %c0_i32_0 = arith.constant 0 : i32
    return %arg0, %c0_i32 : i32, i32
  }
}

</mosaic_0001>

<llo_original>
// kernel: tpu_custom_call.1
$region0: #{tpu_custom_call.1}
  #allocation0 [shape = 'u32[]', space=smem, size = 0x4, offset = 0x4, fixed_abs, tag = 'smem constant byte address 0x4 - core index']
  #allocation1 [shape = 'u32[72,128]{1,0:T(1,128)}', space=vmem, size = 0x9000, scoped, tag = 'internal scratch']
  %s0 = inlined_call_operand.vmem [shape: s32[8,2], index: 0, kind: input, shape index: {}]
  %s1 = inlined_call_operand.vmem [shape: f32[8,16], index: 1, kind: input, shape index: {}]
  %s2 = inlined_call_operand.hbm [shape: f32[8,32], index: 2, kind: input, shape index: {}]
  %s3 = inlined_call_operand.hbm [shape: f32[8,48], index: 3, kind: output, shape index: {}]
  %s4 = sld [smem:[#allocation0]]
  $region26: #{tpu_custom_call.1} parent=0
    _
  %s6 = ssub.s32 1, %s4
  %s7 = scalar_select 0, %s6, %s4
  $region1: #{tpu_custom_call.1} parent=0
    #allocation2 [shape = 'u8[4096]{0}', space=vmem, size = 0x1000, scoped, tag = 'input window, operand 2, single buffered']
    #allocation3 [shape = 's32[1]{0}', space=sflag, size = 0x4, scoped, tag = 'scoped memory for tpu_custom_call.1']
    #allocation4 [shape = 's32[1]{0}', space=sflag, size = 0x4, scoped, tag = 'scoped memory for tpu_custom_call.1']
    #allocation5 [shape = 'u8[4096]{0}', space=vmem, size = 0x1000, scoped, tag = 'output window, operand 0, single buffered']
    %8 = vsyncpa [#allocation3], 0
    %9 = vsyncpa [#allocation4], 0
    // Predicated region
    $region2: #{tpu_custom_call.1} parent=1 // pred_check
      _
    $region3: #{tpu_custom_call.1} parent=1 // pred_check_branch
      %11 = sbr.rel (0) target = $region5
    $region4: #{tpu_custom_call.1} parent=1 // pred_region
      _
    $region5: #{tpu_custom_call.1} parent=1 // pred_fallthru
      _
    // Predicated region
    $region6: #{tpu_custom_call.1} parent=1 // pred_check
      _
    $region7: #{tpu_custom_call.1} parent=1 // pred_check_branch
      %13 = sbr.rel (0) target = $region9
    $region8: #{tpu_custom_call.1} parent=1 // pred_region
      _
    $region9: #{tpu_custom_call.1} parent=1 // pred_fallthru
      _
    // Predicated region
    $region10: #{tpu_custom_call.1} parent=1 // pred_check
      _
    $region11: #{tpu_custom_call.1} parent=1 // pred_check_branch
      %15 = sbr.rel (0) target = $region13
    $region12: #{tpu_custom_call.1} parent=1 // pred_region
      %17 = vsyncadd [#allocation3], 0
      %s19 = sshll.u32 %s2, 4
      %s20 = int_to_ptr.hbm [resolvable:$true] %s19
      %s21 = sshll.u32 [#allocation2], 4
      %s22 = int_to_ptr.vmem [resolvable:$true] %s21
      %24 = dma.hbm_to_vmem [thread:$0]  %s20, 128, %s22, [#allocation3]
    $region13: #{tpu_custom_call.1} parent=1 // pred_fallthru
      _
    // Predicated region
    $region14: #{tpu_custom_call.1} parent=1 // pred_check
      _
    $region15: #{tpu_custom_call.1} parent=1 // pred_check_branch
      %26 = sbr.rel (0) target = $region17
    $region16: #{tpu_custom_call.1} parent=1 // pred_region
      %28 = dma.done [#allocation3], 128
    $region17: #{tpu_custom_call.1} parent=1 // pred_fallthru
      _
    %v29 = vld [vmem:[%s0] sm:$0xff]
    %v30 = vlaneseq
    %v31 = vand.u32 %v30, 127
    %32 = vset.pattern.permute.xlu0 0
    %33 = vperm.xlu0 %32, %v29
    %v34 = vpop.permute.xlu0 %33
    %vm35 = vcmp.eq.s32.totalorder %v34, %v31
    %v36 = vsel %vm35, 1, 0
    %v37 = vcvt.s32.f32 %v36
    %v38 = vld [vmem:[%s1] sm:$0xff]
    %vm39 = vcmask 64512
    %v41 = vsel %vm39, %v37, 0
    %43 = vmatpush.msra.mxu0 0.0
    %44 = vmatpush.msra.mxu0 0.0
    %45 = vmatpush.msra.mxu0 0.0
    %46 = vmatpush.msra.mxu0 0.0
    %47 = vmatpush.msra.mxu0 0.0
    %48 = vmatpush.msra.mxu0 0.0
    %49 = vmatpush.msra.mxu0 0.0
    %50 = vmatpush.msra.mxu0 0.0
    %51 = vmatpush.msra.mxu0 0.0
    %52 = vmatpush.msra.mxu0 0.0
    %53 = vmatpush.msra.mxu0 0.0
    %54 = vmatpush.msra.mxu0 0.0
    %55 = vmatpush.msra.mxu0 0.0
    %56 = vmatpush.msra.mxu0 0.0
    %57 = vmatpush.msra.mxu0 0.0
    %v58 = vand.u32 %v38, 4294901760
    %59 = vmatpush.msra.mxu0 %v58
    %v60 = vand.u32 %v41, 4294901760
    %v61 = vsub.f32 %v41, %v60
    %v62 = vand.u32 %v61, 4294901760
    %v63 = vsub.f32 %v61, %v62
    %v64 = vand.u32 %v63, 4294901760
    %65 = vmatmul.f32.gmra.mxu0 %v64
    %v66 = vpop.f32.mrf.mxu0
    %v67 = vadd.f32 0.0, %v66
    %68 = vdwg.mxu0
    %69 = vmatpush.msra.mxu0 0.0
    %70 = vmatpush.msra.mxu0 0.0
    %71 = vmatpush.msra.mxu0 0.0
    %72 = vmatpush.msra.mxu0 0.0
    %73 = vmatpush.msra.mxu0 0.0
    %74 = vmatpush.msra.mxu0 0.0
    %75 = vmatpush.msra.mxu0 0.0
    %76 = vmatpush.msra.mxu0 0.0
    %77 = vmatpush.msra.mxu0 0.0
    %78 = vmatpush.msra.mxu0 0.0
    %79 = vmatpush.msra.mxu0 0.0
    %80 = vmatpush.msra.mxu0 0.0
    %81 = vmatpush.msra.mxu0 0.0
    %82 = vmatpush.msra.mxu0 0.0
    %83 = vmatpush.msra.mxu0 0.0
    %v84 = vand.u32 %v38, 4294901760
    %v85 = vsub.f32 %v38, %v84
    %v86 = vand.u32 %v85, 4294901760
    %v87 = vsub.f32 %v85, %v86
    %v88 = vand.u32 %v87, 4294901760
    %89 = vmatpush.msra.mxu0 %v88
    %v90 = vand.u32 %v41, 4294901760
    %91 = vmatmul.f32.gmra.mxu0 %v90
    %v92 = vpop.f32.mrf.mxu0
    %v93 = vadd.f32 %v67, %v92
    %94 = vdwg.mxu0
    %95 = vmatpush.msra.mxu0 0.0
    %96 = vmatpush.msra.mxu0 0.0
    %97 = vmatpush.msra.mxu0 0.0
    %98 = vmatpush.msra.mxu0 0.0
    %99 = vmatpush.msra.mxu0 0.0
    %100 = vmatpush.msra.mxu0 0.0
    %101 = vmatpush.msra.mxu0 0.0
    %102 = vmatpush.msra.mxu0 0.0
    %103 = vmatpush.msra.mxu0 0.0
    %104 = vmatpush.msra.mxu0 0.0
    %105 = vmatpush.msra.mxu0 0.0
    %106 = vmatpush.msra.mxu0 0.0
    %107 = vmatpush.msra.mxu0 0.0
    %108 = vmatpush.msra.mxu0 0.0
    %109 = vmatpush.msra.mxu0 0.0
    %v110 = vand.u32 %v38, 4294901760
    %v111 = vsub.f32 %v38, %v110
    %112 = vmatpush.msra.mxu0 %v111
    %v113 = vand.u32 %v41, 4294901760
    %v114 = vsub.f32 %v41, %v113
    %115 = vmatmul.f32.gmra.mxu0 %v114
    %v116 = vpop.f32.mrf.mxu0
    %v117 = vadd.f32 %v93, %v116
    %118 = vdwg.mxu0
    %119 = vmatpush.msra.mxu0 0.0
    %120 = vmatpush.msra.mxu0 0.0
    %121 = vmatpush.msra.mxu0 0.0
    %122 = vmatpush.msra.mxu0 0.0
    %123 = vmatpush.msra.mxu0 0.0
    %124 = vmatpush.msra.mxu0 0.0
    %125 = vmatpush.msra.mxu0 0.0
    %126 = vmatpush.msra.mxu0 0.0
    %127 = vmatpush.msra.mxu0 0.0
    %128 = vmatpush.msra.mxu0 0.0
    %129 = vmatpush.msra.mxu0 0.0
    %130 = vmatpush.msra.mxu0 0.0
    %131 = vmatpush.msra.mxu0 0.0
    %132 = vmatpush.msra.mxu0 0.0
    %133 = vmatpush.msra.mxu0 0.0
    %v134 = vand.u32 %v38, 4294901760
    %135 = vmatpush.msra.mxu0 %v134
    %v136 = vand.u32 %v41, 4294901760
    %v137 = vsub.f32 %v41, %v136
    %v138 = vand.u32 %v137, 4294901760
    %139 = vmatmul.f32.gmra.mxu0 %v138
    %v140 = vpop.f32.mrf.mxu0
    %v141 = vadd.f32 %v117, %v140
    %142 = vdwg.mxu0
    %143 = vmatpush.msra.mxu0 0.0
    %144 = vmatpush.msra.mxu0 0.0
    %145 = vmatpush.msra.mxu0 0.0
    %146 = vmatpush.msra.mxu0 0.0
    %147 = vmatpush.msra.mxu0 0.0
    %148 = vmatpush.msra.mxu0 0.0
    %149 = vmatpush.msra.mxu0 0.0
    %150 = vmatpush.msra.mxu0 0.0
    %151 = vmatpush.msra.mxu0 0.0
    %152 = vmatpush.msra.mxu0 0.0
    %153 = vmatpush.msra.mxu0 0.0
    %154 = vmatpush.msra.mxu0 0.0
    %155 = vmatpush.msra.mxu0 0.0
    %156 = vmatpush.msra.mxu0 0.0
    %157 = vmatpush.msra.mxu0 0.0
    %v158 = vand.u32 %v38, 4294901760
    %v159 = vsub.f32 %v38, %v158
    %v160 = vand.u32 %v159, 4294901760
    %161 = vmatpush.msra.mxu0 %v160
    %v162 = vand.u32 %v41, 4294901760
    %163 = vmatmul.f32.gmra.mxu0 %v162
    %v164 = vpop.f32.mrf.mxu0
    %v165 = vadd.f32 %v141, %v164
    %166 = vdwg.mxu0
    %167 = vmatpush.msra.mxu0 0.0
    %168 = vmatpush.msra.mxu0 0.0
    %169 = vmatpush.msra.mxu0 0.0
    %170 = vmatpush.msra.mxu0 0.0
    %171 = vmatpush.msra.mxu0 0.0
    %172 = vmatpush.msra.mxu0 0.0
    %173 = vmatpush.msra.mxu0 0.0
    %174 = vmatpush.msra.mxu0 0.0
    %175 = vmatpush.msra.mxu0 0.0
    %176 = vmatpush.msra.mxu0 0.0
    %177 = vmatpush.msra.mxu0 0.0
    %178 = vmatpush.msra.mxu0 0.0
    %179 = vmatpush.msra.mxu0 0.0
    %180 = vmatpush.msra.mxu0 0.0
    %181 = vmatpush.msra.mxu0 0.0
    %v182 = vand.u32 %v38, 4294901760
    %183 = vmatpush.msra.mxu0 %v182
    %v184 = vand.u32 %v41, 4294901760
    %185 = vmatmul.f32.gmra.mxu0 %v184
    %v186 = vpop.f32.mrf.mxu0
    %v187 = vadd.f32 %v165, %v186
    %188 = vdwg.mxu0
    %189 = vset.pattern.permute.xlu0 1
    %190 = vperm.xlu0 %189, %v29
    %v191 = vpop.permute.xlu0 %190
    %vm192 = vcmp.eq.s32.totalorder %v191, %v31
    %v193 = vsel %vm192, 1, 0
    %v194 = vcvt.s32.f32 %v193
    %v195 = vld [vmem:[#allocation2] sm:$0xff]
    %v197 = vsel %vm39, %v194, 0
    %199 = vmatpush.msra.mxu0 0.0
    %200 = vmatpush.msra.mxu0 0.0
    %201 = vmatpush.msra.mxu0 0.0
    %202 = vmatpush.msra.mxu0 0.0
    %203 = vmatpush.msra.mxu0 0.0
    %204 = vmatpush.msra.mxu0 0.0
    %205 = vmatpush.msra.mxu0 0.0
    %206 = vmatpush.msra.mxu0 0.0
    %207 = vmatpush.msra.mxu0 0.0
    %208 = vmatpush.msra.mxu0 0.0
    %209 = vmatpush.msra.mxu0 0.0
    %210 = vmatpush.msra.mxu0 0.0
    %211 = vmatpush.msra.mxu0 0.0
    %212 = vmatpush.msra.mxu0 0.0
    %213 = vmatpush.msra.mxu0 0.0
    %v214 = vand.u32 %v195, 4294901760
    %215 = vmatpush.msra.mxu0 %v214
    %v216 = vand.u32 %v197, 4294901760
    %v217 = vsub.f32 %v197, %v216
    %v218 = vand.u32 %v217, 4294901760
    %v219 = vsub.f32 %v217, %v218
    %v220 = vand.u32 %v219, 4294901760
    %221 = vmatmul.f32.gmra.mxu0 %v220
    %v222 = vpop.f32.mrf.mxu0
    %v223 = vadd.f32 0.0, %v222
    %224 = vdwg.mxu0
    %225 = vmatpush.msra.mxu0 0.0
    %226 = vmatpush.msra.mxu0 0.0
    %227 = vmatpush.msra.mxu0 0.0
    %228 = vmatpush.msra.mxu0 0.0
    %229 = vmatpush.msra.mxu0 0.0
    %230 = vmatpush.msra.mxu0 0.0
    %231 = vmatpush.msra.mxu0 0.0
    %232 = vmatpush.msra.mxu0 0.0
    %233 = vmatpush.msra.mxu0 0.0
    %234 = vmatpush.msra.mxu0 0.0
    %235 = vmatpush.msra.mxu0 0.0
    %236 = vmatpush.msra.mxu0 0.0
    %237 = vmatpush.msra.mxu0 0.0
    %238 = vmatpush.msra.mxu0 0.0
    %239 = vmatpush.msra.mxu0 0.0
    %v240 = vand.u32 %v195, 4294901760
    %v241 = vsub.f32 %v195, %v240
    %v242 = vand.u32 %v241, 4294901760
    %v243 = vsub.f32 %v241, %v242
    %v244 = vand.u32 %v243, 4294901760
    %245 = vmatpush.msra.mxu0 %v244
    %v246 = vand.u32 %v197, 4294901760
    %247 = vmatmul.f32.gmra.mxu0 %v246
    %v248 = vpop.f32.mrf.mxu0
    %v249 = vadd.f32 %v223, %v248
    %250 = vdwg.mxu0
    %251 = vmatpush.msra.mxu0 0.0
    %252 = vmatpush.msra.mxu0 0.0
    %253 = vmatpush.msra.mxu0 0.0
    %254 = vmatpush.msra.mxu0 0.0
    %255 = vmatpush.msra.mxu0 0.0
    %256 = vmatpush.msra.mxu0 0.0
    %257 = vmatpush.msra.mxu0 0.0
    %258 = vmatpush.msra.mxu0 0.0
    %259 = vmatpush.msra.mxu0 0.0
    %260 = vmatpush.msra.mxu0 0.0
    %261 = vmatpush.msra.mxu0 0.0
    %262 = vmatpush.msra.mxu0 0.0
    %263 = vmatpush.msra.mxu0 0.0
    %264 = vmatpush.msra.mxu0 0.0
    %265 = vmatpush.msra.mxu0 0.0
    %v266 = vand.u32 %v195, 4294901760
    %v267 = vsub.f32 %v195, %v266
    %268 = vmatpush.msra.mxu0 %v267
    %v269 = vand.u32 %v197, 4294901760
    %v270 = vsub.f32 %v197, %v269
    %271 = vmatmul.f32.gmra.mxu0 %v270
    %v272 = vpop.f32.mrf.mxu0
    %v273 = vadd.f32 %v249, %v272
    %274 = vdwg.mxu0
    %275 = vmatpush.msra.mxu0 0.0
    %276 = vmatpush.msra.mxu0 0.0
    %277 = vmatpush.msra.mxu0 0.0
    %278 = vmatpush.msra.mxu0 0.0
    %279 = vmatpush.msra.mxu0 0.0
    %280 = vmatpush.msra.mxu0 0.0
    %281 = vmatpush.msra.mxu0 0.0
    %282 = vmatpush.msra.mxu0 0.0
    %283 = vmatpush.msra.mxu0 0.0
    %284 = vmatpush.msra.mxu0 0.0
    %285 = vmatpush.msra.mxu0 0.0
    %286 = vmatpush.msra.mxu0 0.0
    %287 = vmatpush.msra.mxu0 0.0
    %288 = vmatpush.msra.mxu0 0.0
    %289 = vmatpush.msra.mxu0 0.0
    %v290 = vand.u32 %v195, 4294901760
    %291 = vmatpush.msra.mxu0 %v290
    %v292 = vand.u32 %v197, 4294901760
    %v293 = vsub.f32 %v197, %v292
    %v294 = vand.u32 %v293, 4294901760
    %295 = vmatmul.f32.gmra.mxu0 %v294
    %v296 = vpop.f32.mrf.mxu0
    %v297 = vadd.f32 %v273, %v296
    %298 = vdwg.mxu0
    %299 = vmatpush.msra.mxu0 0.0
    %300 = vmatpush.msra.mxu0 0.0
    %301 = vmatpush.msra.mxu0 0.0
    %302 = vmatpush.msra.mxu0 0.0
    %303 = vmatpush.msra.mxu0 0.0
    %304 = vmatpush.msra.mxu0 0.0
    %305 = vmatpush.msra.mxu0 0.0
    %306 = vmatpush.msra.mxu0 0.0
    %307 = vmatpush.msra.mxu0 0.0
    %308 = vmatpush.msra.mxu0 0.0
    %309 = vmatpush.msra.mxu0 0.0
    %310 = vmatpush.msra.mxu0 0.0
    %311 = vmatpush.msra.mxu0 0.0
    %312 = vmatpush.msra.mxu0 0.0
    %313 = vmatpush.msra.mxu0 0.0
    %v314 = vand.u32 %v195, 4294901760
    %v315 = vsub.f32 %v195, %v314
    %v316 = vand.u32 %v315, 4294901760
    %317 = vmatpush.msra.mxu0 %v316
    %v318 = vand.u32 %v197, 4294901760
    %319 = vmatmul.f32.gmra.mxu0 %v318
    %v320 = vpop.f32.mrf.mxu0
    %v321 = vadd.f32 %v297, %v320
    %322 = vdwg.mxu0
    %323 = vmatpush.msra.mxu0 0.0
    %324 = vmatpush.msra.mxu0 0.0
    %325 = vmatpush.msra.mxu0 0.0
    %326 = vmatpush.msra.mxu0 0.0
    %327 = vmatpush.msra.mxu0 0.0
    %328 = vmatpush.msra.mxu0 0.0
    %329 = vmatpush.msra.mxu0 0.0
    %330 = vmatpush.msra.mxu0 0.0
    %331 = vmatpush.msra.mxu0 0.0
    %332 = vmatpush.msra.mxu0 0.0
    %333 = vmatpush.msra.mxu0 0.0
    %334 = vmatpush.msra.mxu0 0.0
    %335 = vmatpush.msra.mxu0 0.0
    %336 = vmatpush.msra.mxu0 0.0
    %337 = vmatpush.msra.mxu0 0.0
    %v338 = vand.u32 %v195, 4294901760
    %339 = vmatpush.msra.mxu0 %v338
    %v340 = vand.u32 %v197, 4294901760
    %341 = vmatmul.f32.gmra.mxu0 %v340
    %v342 = vpop.f32.mrf.mxu0
    %v343 = vadd.f32 %v321, %v342
    %344 = vdwg.mxu0
    %346 = vrot.lane.b32.xlu0 %v343, 16
    %v347 = vpop.permute.xlu0 %346
    %vm349 = vcmask 130048
    %v350 = vsel %vm349, %v187, %v347
    %vm351 = vcmask 392192
    %352 = vst.msk [vmem:[#allocation5] sm:$0xff] %vm351, %v350
    // Predicated region
    $region18: #{tpu_custom_call.1} parent=1 // pred_check
      _
    $region19: #{tpu_custom_call.1} parent=1 // pred_check_branch
      %354 = sbr.rel (0) target = $region21
    $region20: #{tpu_custom_call.1} parent=1 // pred_region
      %356 = vsyncadd [#allocation4], 0
      %s358 = sshll.u32 [#allocation5], 4
      %s359 = int_to_ptr.vmem [resolvable:$true] %s358
      %s360 = sshll.u32 %s3, 4
      %s361 = int_to_ptr.hbm [resolvable:$true] %s360
      %363 = dma.vmem_to_hbm [thread:$0]  %s359, 128, %s361, [#allocation4]
    $region21: #{tpu_custom_call.1} parent=1 // pred_fallthru
      _
    // Predicated region
    $region22: #{tpu_custom_call.1} parent=1 // pred_check
      _
    $region23: #{tpu_custom_call.1} parent=1 // pred_check_branch
      %365 = sbr.rel (0) target = $region25
    $region24: #{tpu_custom_call.1} parent=1 // pred_region
      %367 = dma.done [#allocation4], 128
    $region25: #{tpu_custom_call.1} parent=1 // pred_fallthru
      _
    %368 = vsyncpa [#allocation3], 1
    %369 = vsyncpa [#allocation4], 1

</llo_original>
